<compile_context>
chip_gen: v6e
topology: v6e:2x2x1
jax: 0.10.0
libtpu: 0.0.40
codegen_flags: <defaults>
</compile_context>

<pallas_src>
import math
from functools import partial

import jax
import jax.numpy as jnp
from jax import lax
from jax.experimental import pallas as pl
from jax.experimental.pallas import tpu as pltpu

# ----------------------------- model hyper-params (small synthetic config) ----------------
C_F = 8      # fine   (1/2 resolution) channels
C_M = 16     # medium (1/4 resolution) channels
C_C = 32     # coarse (1/8 resolution) channels == d_model
NHEAD = 2
NUM_MATCHES = 4          # fixed number of coarse matches (static-shape stand-in for thresholding)
COARSE_TEMP = 0.1
FINE_TEMP = 0.1

_PAR1 = pltpu.CompilerParams(dimension_semantics=("parallel",))


# ===================================== Pallas kernels =====================================

def _matmul_t_kernel(*refs, relu, has_bias):
    """Lane-dense transposed conv matmul:  o = w^T @ x^T  (+ bias) (+ relu)."""
    if has_bias:
        wt_ref, xt_ref, b_ref, o_ref = refs
    else:
        wt_ref, xt_ref, o_ref = refs
    y = jnp.dot(wt_ref[...], xt_ref[...], preferred_element_type=jnp.float32)
    if has_bias:
        y = y + b_ref[...]
    if relu:
        y = jnp.maximum(y, 0.0)
    o_ref[...] = y


def matmul_t(wT, xT, b=None, relu=False):
    """wT: (Cout, K), xT: (K, M) -> (Cout, M).  Lane-dense output, M padded to 128, tiled."""
    Cout, Kd = wT.shape
    M = xT.shape[1]
    Mp = ((M + 127) // 128) * 128            # pad M so stores are always lane-dense
    if Mp != M:
        xT = jnp.pad(xT, ((0, 0), (0, Mp - M)))
    TN = 128
    for cand in (512, 256):                  # prefer big tiles but keep >=2 grid steps (v7x)
        if Mp % cand == 0 and Mp // cand >= 2:
            TN = cand
            break
    has_bias = b is not None
    args = [wT.astype(jnp.bfloat16), xT.astype(jnp.bfloat16)]
    in_specs = [pl.BlockSpec((Cout, Kd), lambda i: (0, 0)),
                pl.BlockSpec((Kd, TN), lambda i: (0, i))]
    if has_bias:
        args.append(b.reshape(Cout, 1).astype(jnp.float32))
        in_specs.append(pl.BlockSpec((Cout, 1), lambda i: (0, 0)))
    y = pl.pallas_call(
        partial(_matmul_t_kernel, relu=relu, has_bias=has_bias),
        out_shape=jax.ShapeDtypeStruct((Cout, Mp), jnp.float32),
        grid=(Mp // TN,),
        in_specs=in_specs,
        out_specs=pl.BlockSpec((Cout, TN), lambda i: (0, i)),
        compiler_params=pltpu.CompilerParams(
            dimension_semantics=("parallel",),
            vmem_limit_bytes=32 * 1024 * 1024),
    )(*args)
    return y[:, :M] if Mp != M else y


def _imgnorm_kernel(x_ref, o_ref, *, eps, n_elem):
    x = x_ref[0]
    mu = jnp.mean(x, keepdims=True)
    var = jnp.sum((x - mu) ** 2, keepdims=True) / (n_elem - 1)   # unbiased, like torch.std
    o_ref[0] = (x - mu) / (jnp.sqrt(var) + eps)                  # exact divide (top-K critical)


def normalize_images(img):
    """img: (N, 1, H, W) -> per-image (x - mean) / (std + eps), std over H,W (unbiased)."""
    N, _, H, W = img.shape
    x = img.reshape(N, H, W).astype(jnp.float32)
    y = pl.pallas_call(
        partial(_imgnorm_kernel, eps=1e-6, n_elem=H * W),
        out_shape=jax.ShapeDtypeStruct((N, H, W), jnp.float32),
        grid=(N,),
        in_specs=[pl.BlockSpec((1, H, W), lambda i: (i, 0, 0))],
        out_specs=pl.BlockSpec((1, H, W), lambda i: (i, 0, 0)),
        compiler_params=_PAR1,
    )(x)
    return y.reshape(N, 1, H, W)


# ----------------------------- fused LoFTR coarse encoder layer ---------------------------

def _coarse_layer_kernel(*refs, nhead, dh, add_pe, is_self, eps):
    C = nhead * dh
    idx = 0
    x_ref = refs[idx]; idx += 1
    s_ref = None
    if not is_self:
        s_ref = refs[idx]; idx += 1
    pe_ref = None
    if add_pe:
        pe_ref = refs[idx]; idx += 1
    if is_self:
        wqkv_ref = refs[idx]; idx += 1
    else:
        wq_ref, wkv_ref = refs[idx], refs[idx + 1]; idx += 2
    (wm_ref, bm_ref, g1_ref, b1_ref, w1x_ref, w1m_ref, b1m_ref,
     w2_ref, b2m_ref, g2_ref, b2_ref, o_ref) = refs[idx:]

    x = x_ref[0]
    if add_pe:
        x = x + pe_ref[0]
    xb = x.astype(jnp.bfloat16)
    sb = xb if is_self else s_ref[0].astype(jnp.bfloat16)

    # packed projections (single matmul for self; q + packed kv for cross)
    if is_self:
        qkv = jnp.dot(xb, wqkv_ref[...], preferred_element_type=jnp.float32)
        q, k, v = qkv[:, :C], qkv[:, C:2 * C], qkv[:, 2 * C:]
    else:
        q = jnp.dot(xb, wq_ref[...], preferred_element_type=jnp.float32)
        kv = jnp.dot(sb, wkv_ref[...], preferred_element_type=jnp.float32)
        k, v = kv[:, :C], kv[:, C:]

    # TODO(synk): at production L (~4800) add a kv grid axis with flash-style online softmax;
    #             the full (L, S) score matrix below only fits VMEM at toy sizes.
    scale = 1.0 / math.sqrt(dh)
    dn = (((1,), (1,)), ((), ()))     # contract last dims (q @ k^T without explicit transpose)
    heads = []
    for h in range(nhead):
        sl = slice(h * dh, (h + 1) * dh)
        qh = q[:, sl].astype(jnp.bfloat16)
        kh = k[:, sl].astype(jnp.bfloat16)
        vh = v[:, sl].astype(jnp.bfloat16)
        sc = lax.dot_general(qh, kh, dn, preferred_element_type=jnp.float32) * scale
        sc = sc - jnp.max(sc, axis=-1, keepdims=True)
        e = jnp.exp(sc)
        p = e * pl.reciprocal(jnp.sum(e, axis=-1, keepdims=True), approx=True)
        heads.append(jnp.dot(p.astype(jnp.bfloat16), vh, preferred_element_type=jnp.float32))
    merged = heads[0] if nhead == 1 else jnp.concatenate(heads, axis=-1)   # (L, C)
    msg = jnp.dot(merged.astype(jnp.bfloat16), wm_ref[...],
                  preferred_element_type=jnp.float32) + bm_ref[...]

    # LayerNorm 1 (f32)
    mu = jnp.mean(msg, axis=-1, keepdims=True)
    var = jnp.mean((msg - mu) ** 2, axis=-1, keepdims=True)
    msg = (msg - mu) * lax.rsqrt(var + eps) * g1_ref[...] + b1_ref[...]

    # MLP on concat([x, msg]) == x @ w1[:C] + msg @ w1[C:]
    hdn = (jnp.dot(xb, w1x_ref[...], preferred_element_type=jnp.float32)
           + jnp.dot(msg.astype(jnp.bfloat16), w1m_ref[...], preferred_element_type=jnp.float32)
           + b1m_ref[...])
    hdn = jnp.maximum(hdn, 0.0)
    hdn = jnp.dot(hdn.astype(jnp.bfloat16), w2_ref[...],
                  preferred_element_type=jnp.float32) + b2m_ref[...]

    # LayerNorm 2 + residual
    mu2 = jnp.mean(hdn, axis=-1, keepdims=True)
    var2 = jnp.mean((hdn - mu2) ** 2, axis=-1, keepdims=True)
    hdn = (hdn - mu2) * lax.rsqrt(var2 + eps) * g2_ref[...] + b2_ref[...]
    o_ref[0] = x + hdn


def loftr_encoder_layer(lp, x, source, nhead, pe_nlc=None, add_pe=False):
    """Fused LoFTR encoder layer on (N, L, C); source=None => self-attention (no source DMA)."""
    is_self = source is None
    N, L, C = x.shape
    dh = C // nhead
    bf = jnp.bfloat16
    row = lambda v: v.reshape(1, -1).astype(jnp.float32)

    args = [x]
    in_specs = [pl.BlockSpec((1, L, C), lambda b: (b, 0, 0))]
    if not is_self:
        S = source.shape[1]
        args.append(source)
        in_specs.append(pl.BlockSpec((1, S, C), lambda b: (b, 0, 0)))
    if add_pe:
        args.append(pe_nlc)
        in_specs.append(pl.BlockSpec((1, L, C), lambda b: (0, 0, 0)))

    if is_self:
        wproj = [jnp.concatenate([lp['wq'], lp['wk'], lp['wv']], axis=1).astype(bf)]  # (C, 3C)
    else:
        wproj = [lp['wq'].astype(bf),
                 jnp.concatenate([lp['wk'], lp['wv']], axis=1).astype(bf)]            # (C,C),(C,2C)
    weights = wproj + [
        lp['w_merge'].astype(bf), row(lp['b_merge']),
        row(lp['ln1_g']), row(lp['ln1_b']),
        lp['w_mlp1'][:C].astype(bf), lp['w_mlp1'][C:].astype(bf), row(lp['b_mlp1']),
        lp['w_mlp2'].astype(bf), row(lp['b_mlp2']),
        row(lp['ln2_g']), row(lp['ln2_b'])]
    args += weights
    in_specs += [pl.BlockSpec(a.shape, lambda b: (0, 0)) for a in weights]

    return pl.pallas_call(
        partial(_coarse_layer_kernel, nhead=nhead, dh=dh,
                add_pe=add_pe, is_self=is_self, eps=1e-5),
        out_shape=jax.ShapeDtypeStruct((N, L, C), jnp.float32),
        grid=(N,),
        in_specs=in_specs,
        out_specs=pl.BlockSpec((1, L, C), lambda b: (b, 0, 0)),
        compiler_params=_PAR1,
    )(*args)


# ----------------------------- coarse dual-softmax matching -------------------------------

def _dual_softmax_kernel(f0_ref, f1_ref, conf_ref, *, inv_temp):
    f0 = f0_ref[0].astype(jnp.bfloat16)
    f1 = f1_ref[0].astype(jnp.bfloat16)
    sim = lax.dot_general(f0, f1, (((1,), (1,)), ((), ())),
                          preferred_element_type=jnp.float32) * inv_temp
    e0 = jnp.exp(sim - jnp.max(sim, axis=0, keepdims=True))
    p0 = e0 / jnp.sum(e0, axis=0, keepdims=True)     # exact divide (feeds top-K), torch dim=1
    e1 = jnp.exp(sim - jnp.max(sim, axis=1, keepdims=True))
    p1 = e1 / jnp.sum(e1, axis=1, keepdims=True)     # torch dim=2
    conf_ref[0] = p0 * p1


def coarse_matching(feat_c0, feat_c1, data, temperature=COARSE_TEMP, num_matches=NUM_MATCHES):
    N, L, C = feat_c0.shape
    S = feat_c1.shape[1]
    inv_temp = 1.0 / (C * temperature)   # feat/C**.5 on each side, then / temperature
    # TODO(synk): at production L (~4800) tile this over L rows flash-style; full (L,S) block
    #             only fits VMEM at toy sizes (and never on v7x's 64 MiB).
    conf = pl.pallas_call(
        partial(_dual_softmax_kernel, inv_temp=inv_temp),
        out_shape=jax.ShapeDtypeStruct((N, L, S), jnp.float32),
        grid=(N,),
        in_specs=[pl.BlockSpec((1, L, C), lambda i: (i, 0, 0)),
                  pl.BlockSpec((1, S, C), lambda i: (i, 0, 0))],
        out_specs=pl.BlockSpec((1, L, S), lambda i: (i, 0, 0)),
        compiler_params=_PAR1,
    )(feat_c0, feat_c1)
    data['conf_matrix'] = conf
    # TODO(synk): thresholded mutual-nearest-neighbor selection has dynamic output size;
    #             replaced by deterministic fixed-K top-K over the confidence matrix.
    vals, idx = lax.top_k(conf.reshape(-1), num_matches)
    b_ids = idx // (L * S)
    i_ids = (idx % (L * S)) // S
    j_ids = idx % S
    data.update({'b_ids': b_ids, 'i_ids': i_ids, 'j_ids': j_ids, 'mconf': vals})


# ----------------------------- fused fine process + fine matching -------------------------

def _fine_kernel(i0_ref, i1_ref,
                 wf0_ref, wf1_ref, wm0_ref, wm1_ref, c0_ref, c1_ref,
                 up_ref, wmp_ref, bmp_ref, wcp_ref, bcp_ref,
                 wq_ref, wk_ref, wv_ref, wo_ref, bo_ref,
                 sim_ref, *, scale_attn, scale_sim):
    del i0_ref, i1_ref   # consumed by the index_maps (scalar-prefetch gather)

    def m_to_f(wm):
        proj = jnp.dot(wm.astype(jnp.bfloat16), wmp_ref[...],
                       preferred_element_type=jnp.float32) + bmp_ref[...]        # (WWm, Cf)
        # exact nearest-neighbour 2x upsample via one-hot f32 selection matmul
        return jnp.dot(up_ref[...], proj, preferred_element_type=jnp.float32)    # (WWf, Cf)

    def c_proj(c):
        return jnp.dot(c.astype(jnp.bfloat16), wcp_ref[...],
                       preferred_element_type=jnp.float32) + bcp_ref[...]        # (1, Cf)

    f0 = wf0_ref[0] + m_to_f(wm0_ref[0]) + c_proj(c0_ref[0])
    f1 = wf1_ref[0] + m_to_f(wm1_ref[0]) + c_proj(c1_ref[0])
    f0b = f0.astype(jnp.bfloat16)
    f1b = f1.astype(jnp.bfloat16)
    dn = (((1,), (1,)), ((), ()))

    def proj(tb, w_ref):
        return jnp.dot(tb, w_ref[...], preferred_element_type=jnp.float32)

    q0, k0, v0 = proj(f0b, wq_ref), proj(f0b, wk_ref), proj(f0b, wv_ref)
    q1, k1, v1 = proj(f1b, wq_ref), proj(f1b, wk_ref), proj(f1b, wv_ref)

    def attend(q, k, v):
        s = lax.dot_general(q.astype(jnp.bfloat16), k.astype(jnp.bfloat16), dn,
                            preferred_element_type=jnp.float32) * scale_attn
        s = s - jnp.max(s, axis=-1, keepdims=True)
        e = jnp.exp(s)
        p = e * pl.reciprocal(jnp.sum(e, axis=-1, keepdims=True), approx=True)
        return jnp.dot(p.astype(jnp.bfloat16), v.astype(jnp.bfloat16),
                       preferred_element_type=jnp.float32)

    m0 = attend(q0, k1, v1)
    m1 = attend(q1, k0, v0)
    m0 = jnp.dot(m0.astype(jnp.bfloat16), wo_ref[...],
                 preferred_element_type=jnp.float32) + bo_ref[...]
    m1 = jnp.dot(m1.astype(jnp.bfloat16), wo_ref[...],
                 preferred_element_type=jnp.float32) + bo_ref[...]
    f0u = f0 + m0
    f1u = f1 + m1
    sim_ref[0] = lax.dot_general(f0u.astype(jnp.bfloat16), f1u.astype(jnp.bfloat16), dn,
                                 preferred_element_type=jnp.float32) * scale_sim


def fine_process_and_match(p, feat_f0, feat_f1, feat_m0, feat_m1, f0c, f1c, data,
                           temperature=FINE_TEMP):
    """Fused fine path: scalar-prefetch window gather + medium/coarse injection + cross
    attention + out-proj + residual + fine similarity, ONE pallas_call over matches."""
    # TODO(synk): original FineProcess (multi-scale fusion U-Net-ish) not available;
    #             approximated by window unfolding + medium/coarse injection + one cross layer.
    b_ids, i_ids, j_ids = data['b_ids'], data['i_ids'], data['j_ids']
    K_ = b_ids.shape[0]
    h0c, w0c = data['hw0_c']
    h1c, w1c = data['hw1_c']
    N, Cf = feat_f0.shape[0], feat_f0.shape[1]
    Cm = feat_m0.shape[1]
    Cc = f0c.shape[-1]
    W_f = data['hw0_f'][0] // h0c        # coarse -> fine scale (4)
    W_m = data['hw0_m'][0] // h0c        # coarse -> medium scale (2)
    WWf, WWm = W_f * W_f, W_m * W_m
    L0, L1 = h0c * w0c, h1c * w1c

    # non-overlapping window unfolds (pure reshape/transpose glue, no gather, no HBM blow-up)
    def unfold(feat_nchw, win):
        n, c, hh, ww = feat_nchw.shape
        hc, wc = hh // win, ww // win
        t = feat_nchw.reshape(n, c, hc, win, wc, win).transpose(0, 2, 4, 3, 5, 1)
        return t.reshape(n * hc * wc, win * win, c)

    wf0_all, wf1_all = unfold(feat_f0, W_f), unfold(feat_f1, W_f)      # (N*Hc*Wc, WWf, Cf)
    wm0_all, wm1_all = unfold(feat_m0, W_m), unfold(feat_m1, W_m)      # (N*Hc*Wc, WWm, Cm)
    c0_all = f0c.reshape(N * L0, 1, Cc)                                # transformed coarse rows
    c1_all = f1c.reshape(N * L1, 1, Cc)

    idx0 = (b_ids * L0 + i_ids).astype(jnp.int32)
    idx1 = (b_ids * L1 + j_ids).astype(jnp.int32)

    # exact nearest-neighbour (medium -> fine) upsample selection matrix
    r = W_f // W_m
    fidx = jnp.arange(WWf)
    midx = (fidx // W_f // r) * W_m + (fidx % W_f) // r
    up_mat = (midx[:, None] == jnp.arange(WWm)[None, :]).astype(jnp.float32)   # (WWf, WWm)

    bf = jnp.bfloat16
    wmp = p['w_mproj'].astype(bf)
    bmp = p['b_mproj'].reshape(1, Cf).astype(jnp.float32)
    wcp = p['w_cproj'].astype(bf)
    bcp = p['b_cproj'].reshape(1, Cf).astype(jnp.float32)
    wq, wk = p['f_wq'].astype(bf), p['f_wk'].astype(bf)
    wv, wo = p['f_wv'].astype(bf), p['f_wo'].astype(bf)
    bo = p['f_bo'].reshape(1, Cf).astype(jnp.float32)

    row0 = lambda a: pl.BlockSpec((1,) + a.shape[1:], lambda k, i0, i1: (i0[k], 0, 0))
    row1 = lambda a: pl.BlockSpec((1,) + a.shape[1:], lambda k, i0, i1: (i1[k], 0, 0))
    full = lambda a: pl.BlockSpec(a.shape, lambda k, i0, i1: (0,) * a.ndim)

    grid_spec = pltpu.PrefetchScalarGridSpec(
        num_scalar_prefetch=2, grid=(K_,),
        in_specs=[row0(wf0_all), row1(wf1_all), row0(wm0_all), row1(wm1_all),
                  row0(c0_all), row1(c1_all),
                  full(up_mat), full(wmp), full(bmp), full(wcp), full(bcp),
                  full(wq), full(wk), full(wv), full(wo), full(bo)],
        out_specs=pl.BlockSpec((1, WWf, WWf), lambda k, i0, i1: (k, 0, 0)))

    sim = pl.pallas_call(
        partial(_fine_kernel,
                scale_attn=1.0 / math.sqrt(Cf),
                scale_sim=1.0 / (math.sqrt(Cf) * temperature)),
        out_shape=jax.ShapeDtypeStruct((K_, WWf, WWf), jnp.float32),
        grid_spec=grid_spec,
        compiler_params=_PAR1,
    )(idx0, idx1, wf0_all, wf1_all, wm0_all, wm1_all, c0_all, c1_all,
      up_mat, wmp, bmp, wcp, bcp, wq, wk, wv, wo, bo)

    data['sim_matrix_fine'] = sim
    return sim


# ===================================== glue modules =======================================

def conv2d(x_nchw, w, b, stride, ksize=3, relu=True):
    """3x3 'SAME' conv via im2col (glue) + lane-dense transposed Pallas matmul."""
    # TODO(synk): im2col materializes a 9x-expanded patch tensor in HBM; at real image sizes
    #             form patches per output tile inside the matmul kernel (halo DMA) instead.
    N = x_nchw.shape[0]
    patches = lax.conv_general_dilated_patches(
        x_nchw, filter_shape=(ksize, ksize),
        window_strides=(stride, stride), padding='SAME')     # (N, Cin*k*k, Ho, Wo)
    _, CKK, Ho, Wo = patches.shape
    xT = patches.transpose(1, 0, 2, 3).reshape(CKK, N * Ho * Wo)    # (K, M), M lane-dense
    yT = matmul_t(w.T, xT, b, relu=relu)                            # (Cout, M)
    cout = w.shape[1]
    return yT.reshape(cout, N, Ho, Wo).transpose(1, 0, 2, 3)        # NCHW


def backbone(p, x):
    """Simplified ResNet_8_2: returns (coarse 1/8, medium 1/4, fine 1/2) NCHW features."""
    # TODO(synk): exact ResNet_8_2 residual blocks / FPN not available; approximated by a conv stack.
    x1 = conv2d(x, p['conv1_w'], p['conv1_b'], stride=2)         # (N, C_F, H/2, W/2)
    x1 = conv2d(x1, p['conv1b_w'], p['conv1b_b'], stride=1)      # fine features
    x2 = conv2d(x1, p['conv2_w'], p['conv2_b'], stride=2)        # (N, C_M, H/4, W/4)
    x3 = conv2d(x2, p['conv3_w'], p['conv3_b'], stride=2)        # (N, C_C, H/8, W/8)
    return x3, x2, x1


def sine_pos_encoding(d_model, h, w):
    """LoFTR-style 2D sine positional encoding, (1, C, h, w)."""
    y_pos = (jnp.arange(h, dtype=jnp.float32) + 1.0).reshape(h, 1) * jnp.ones((1, w))
    x_pos = jnp.ones((h, 1)) * (jnp.arange(w, dtype=jnp.float32) + 1.0).reshape(1, w)
    div = jnp.exp(jnp.arange(0, d_model // 2, 2, dtype=jnp.float32)
                  * (-math.log(10000.0) / (d_model // 2))).reshape(-1, 1, 1)
    pe = jnp.zeros((d_model, h, w), jnp.float32)
    pe = pe.at[0::4].set(jnp.sin(x_pos[None] * div))
    pe = pe.at[1::4].set(jnp.cos(x_pos[None] * div))
    pe = pe.at[2::4].set(jnp.sin(y_pos[None] * div))
    pe = pe.at[3::4].set(jnp.cos(y_pos[None] * div))
    return pe[None]


# ===================================== XoFTR forward ======================================

def xoftr_forward(params, data, return_logits=True):
    img0, img1 = data['image0'], data['image1']
    bs = img0.shape[0]
    data.update({'bs': bs, 'hw0_i': tuple(img0.shape[2:]), 'hw1_i': tuple(img1.shape[2:])})

    # both images normalized in one pallas_call (grid = 2N)
    images = normalize_images(jnp.concatenate([img0, img1], axis=0))

    # same-resolution path: batched backbone over concatenated images
    feats_c, feats_m, feats_f = backbone(params, images)
    feat_c0, feat_c1 = feats_c[:bs], feats_c[bs:]
    feat_m0, feat_m1 = feats_m[:bs], feats_m[bs:]
    feat_f0, feat_f1 = feats_f[:bs], feats_f[bs:]

    data.update({'hw0_c': tuple(feat_c0.shape[2:]), 'hw1_c': tuple(feat_c1.shape[2:]),
                 'hw0_m': tuple(feat_m0.shape[2:]), 'hw1_m': tuple(feat_m1.shape[2:]),
                 'hw0_f': tuple(feat_f0.shape[2:]), 'hw1_f': tuple(feat_f1.shape[2:])})

    # TODO(synk): feat_c0_pre / feat_c1_pre (pre-transformer coarse feats) are used by the
    #             reference FineProcess; the simplified fine path below does not need them.

    h0c, w0c = data['hw0_c']
    L = h0c * w0c
    pe = sine_pos_encoding(C_C, h0c, w0c)                       # (1, C, h, w)
    pe_nlc = pe.reshape(1, C_C, L).transpose(0, 2, 1)           # (1, L, C)

    # stacked coarse tokens (2N, L, C): 'self' stage runs both images in ONE fused call
    f01 = feats_c.reshape(2 * bs, C_C, L).transpose(0, 2, 1)

    # TODO(synk): optional mask0/mask1 handling not implemented (example has no padding masks).
    layer_names = ['self', 'cross']
    f0 = f1 = None
    split = False
    for li, (lp, name) in enumerate(zip(params['coarse_layers'], layer_names)):
        add_pe = (li == 0)      # positional-encoding add fused into the first layer's kernel
        if name == 'self':
            if split:
                f01 = jnp.concatenate([f0, f1], axis=0)
                split = False
            f01 = loftr_encoder_layer(lp, f01, None, NHEAD,
                                      pe_nlc if add_pe else None, add_pe)
        else:
            if not split:
                f0, f1 = f01[:bs], f01[bs:]
                split = True
            f0 = loftr_encoder_layer(lp, f0, f1, NHEAD, None, False)
            f1 = loftr_encoder_layer(lp, f1, f0, NHEAD, None, False)
    if not split:
        f0, f1 = f01[:bs], f01[bs:]

    coarse_matching(f0, f1, data)

    sim = fine_process_and_match(params, feat_f0, feat_f1, feat_m0, feat_m1, f0, f1, data)

    if return_logits:
        return sim, sim.transpose(0, 2, 1)
    return None


# ===================================== parameter init =====================================

def init_params(key):
    keys = jax.random.split(key, 32)
    it = iter(keys)

    def lin(fan_in, fan_out):
        k = next(it)
        w = jax.random.normal(k, (fan_in, fan_out), jnp.float32) * (1.0 / math.sqrt(fan_in))
        return w, jnp.zeros((fan_out,), jnp.float32)

    p = {}
    p['conv1_w'], p['conv1_b'] = lin(1 * 9, C_F)
    p['conv1b_w'], p['conv1b_b'] = lin(C_F * 9, C_F)
    p['conv2_w'], p['conv2_b'] = lin(C_F * 9, C_M)
    p['conv3_w'], p['conv3_b'] = lin(C_M * 9, C_C)

    layers = []
    for _ in range(2):
        lp = {}
        lp['wq'], _ = lin(C_C, C_C)
        lp['wk'], _ = lin(C_C, C_C)
        lp['wv'], _ = lin(C_C, C_C)
        lp['w_merge'], lp['b_merge'] = lin(C_C, C_C)
        lp['ln1_g'], lp['ln1_b'] = jnp.ones(C_C), jnp.zeros(C_C)
        lp['w_mlp1'], lp['b_mlp1'] = lin(2 * C_C, 2 * C_C)
        lp['w_mlp2'], lp['b_mlp2'] = lin(2 * C_C, C_C)
        lp['ln2_g'], lp['ln2_b'] = jnp.ones(C_C), jnp.zeros(C_C)
        layers.append(lp)
    p['coarse_layers'] = layers

    p['w_mproj'], p['b_mproj'] = lin(C_M, C_F)
    p['w_cproj'], p['b_cproj'] = lin(C_C, C_F)
    p['f_wq'], _ = lin(C_F, C_F)
    p['f_wk'], _ = lin(C_F, C_F)
    p['f_wv'], _ = lin(C_F, C_F)
    p['f_wo'], p['f_bo'] = lin(C_F, C_F)
    return p


# ========================================== main ==========================================

if __name__ == "__main__":
    key = jax.random.PRNGKey(0)
    kp, k0, k1 = jax.random.split(key, 3)
    params = init_params(kp)

    N, H, W = 2, 32, 32
    image0 = jax.random.normal(k0, (N, 1, H, W), jnp.float32)
    image1 = jax.random.normal(k1, (N, 1, H, W), jnp.float32)
    data = {'image0': image0, 'image1': image1}

    sim, sim_t = xoftr_forward(params, data, return_logits=True)
    jax.block_until_ready((sim, sim_t))
    assert sim.shape == (NUM_MATCHES, 16, 16) and sim_t.shape == (NUM_MATCHES, 16, 16)
    print("KERNEL_OK")
</pallas_src>

<mosaic_0001>
module attributes {stable_mosaic.version = 11 : i64} {
  func.func @_imgnorm_kernel(%arg0: i32, %arg1: memref<1x32x32xf32, #tpu.memory_space<vmem>>, %arg2: memref<1x32x32xf32, #tpu.memory_space<vmem>>) attributes {dimension_semantics = [#tpu.dimension_semantics<parallel>], iteration_bounds = array<i64: 4>, scalar_prefetch = 0 : i64, scratch_operands = 0 : i64, tpu.core_type = #tpu.core_type<tc>, window_params = [{transform_indices = @transform_0, window_bounds = array<i64: 1, 32, 32>}, {transform_indices = @transform_1, window_bounds = array<i64: 1, 32, 32>}]} {
    %c0 = arith.constant 0 : index
    %c0_0 = arith.constant 0 : index
    %c0_1 = arith.constant 0 : index
    %0 = vector.load %arg1[%c0, %c0_0, %c0_1] : memref<1x32x32xf32, #tpu.memory_space<vmem>>, vector<1x32x32xf32>
    %1 = vector.shape_cast %0 : vector<1x32x32xf32> to vector<32x32xf32>
    %2 = vector.shape_cast %1 : vector<32x32xf32> to vector<1x32x32xf32>
    %cst = arith.constant dense<0.000000e+00> : vector<1xf32>
    %3 = vector.multi_reduction <add>, %2, %cst [1, 2] : vector<1x32x32xf32> to vector<1xf32>
    %4 = vector.shape_cast %3 : vector<1xf32> to vector<1x1x1xf32>
    %5 = vector.extract %4[0, 0, 0] : f32 from vector<1x1x1xf32>
    %6 = vector.broadcast %5 : f32 to vector<1x1xf32>
    %cst_2 = arith.constant 1.024000e+03 : f32
    %7 = vector.broadcast %cst_2 : f32 to vector<1x1xf32>
    %8 = arith.divf %6, %7 : vector<1x1xf32>
    %9 = vector.broadcast %8 : vector<1x1xf32> to vector<32x32xf32>
    %10 = arith.subf %1, %9 : vector<32x32xf32>
    %11 = arith.mulf %10, %10 : vector<32x32xf32>
    %12 = vector.shape_cast %11 : vector<32x32xf32> to vector<1x32x32xf32>
    %cst_3 = arith.constant dense<0.000000e+00> : vector<1xf32>
    %13 = vector.multi_reduction <add>, %12, %cst_3 [1, 2] : vector<1x32x32xf32> to vector<1xf32>
    %14 = vector.shape_cast %13 : vector<1xf32> to vector<1x1x1xf32>
    %15 = vector.extract %14[0, 0, 0] : f32 from vector<1x1x1xf32>
    %16 = vector.broadcast %15 : f32 to vector<1x1xf32>
    %cst_4 = arith.constant 1.023000e+03 : f32
    %17 = vector.broadcast %cst_4 : f32 to vector<1x1xf32>
    %18 = arith.divf %16, %17 : vector<1x1xf32>
    %19 = vector.broadcast %8 : vector<1x1xf32> to vector<32x32xf32>
    %20 = arith.subf %1, %19 : vector<32x32xf32>
    %21 = math.sqrt %18 : vector<1x1xf32>
    %cst_5 = arith.constant 9.99999997E-7 : f32
    %22 = vector.broadcast %cst_5 : f32 to vector<1x1xf32>
    %23 = arith.addf %21, %22 : vector<1x1xf32>
    %24 = vector.broadcast %23 : vector<1x1xf32> to vector<32x32xf32>
    %25 = arith.divf %20, %24 : vector<32x32xf32>
    %c0_6 = arith.constant 0 : index
    %c0_7 = arith.constant 0 : index
    %c0_8 = arith.constant 0 : index
    %26 = vector.load %arg2[%c0_6, %c0_7, %c0_8] : memref<1x32x32xf32, #tpu.memory_space<vmem>>, vector<1x32x32xf32>
    %27 = vector.shape_cast %26 : vector<1x32x32xf32> to vector<32x32xf32>
    %28 = vector.shape_cast %25 : vector<32x32xf32> to vector<1x32x32xf32>
    tpu.vector_store %arg2[%c0_6, %c0_7, %c0_8], %28 {strides = array<i32>} : memref<1x32x32xf32, #tpu.memory_space<vmem>>, vector<1x32x32xf32>,
    return
  }
  func.func @transform_0(%arg0: i32) -> (i32, i32, i32) {
    %c0_i32 = arith.constant 0 : i32
    %c0_i32_0 = arith.constant 0 : i32
    %c0_i32_1 = arith.constant 0 : i32
    return %arg0, %c0_i32, %c0_i32_0 : i32, i32, i32
  }
  func.func @transform_1(%arg0: i32) -> (i32, i32, i32) {
    %c0_i32 = arith.constant 0 : i32
    %c0_i32_0 = arith.constant 0 : i32
    %c0_i32_1 = arith.constant 0 : i32
    return %arg0, %c0_i32, %c0_i32_0 : i32, i32, i32
  }
}

</mosaic_0001>

<llo_original>
// kernel: tpu_custom_call.1
$region0: #{tpu_custom_call.1}
  #allocation0 [shape = 'u32[]', space=smem, size = 0x4, offset = 0x4, fixed_abs, tag = 'smem constant byte address 0x4 - core index']
  #allocation1 [shape = 'u32[144,128]{1,0:T(1,128)}', space=vmem, size = 0x12000, scoped, tag = 'internal scratch']
  %s0 = inlined_call_operand.hbm [shape: f32[4,32,32], index: 0, kind: input, shape index: {}]
  %s1 = inlined_call_operand.hbm [shape: f32[4,32,32], index: 1, kind: output, shape index: {}]
  %s2 = sld [smem:[#allocation0]]
  $region41: #{tpu_custom_call.1} parent=0
    _
  %s4 = ssub.s32 1, %s2
  %s5 = scalar_select 0, %s4, %s2
  $region1: #{tpu_custom_call.1} parent=0
    #allocation2 [shape = 'u8[32768]{0}', space=vmem, size = 0x8000, scoped, tag = 'input window, operand 0']
    #allocation3 [shape = 's32[2]{0}', space=sflag, size = 0x8, scoped, tag = 'scoped memory for tpu_custom_call.1']
    #allocation4 [shape = 's32[2]{0}', space=sflag, size = 0x8, scoped, tag = 'scoped memory for tpu_custom_call.1']
    #allocation5 [shape = 'u8[32768]{0}', space=vmem, size = 0x8000, scoped, tag = 'output window, operand 0']
    %6 = vsyncpa [#allocation3], 0
    %s7 = scalar_lea.sflag [#allocation3], 1
    %8 = vsyncpa %s7, 0
    %9 = vsyncpa [#allocation4], 0
    %s10 = scalar_lea.sflag [#allocation4], 1
    %11 = vsyncpa %s10, 0
    loop: start=0, step=1, limit=6
    $region2: #{tpu_custom_call.1} parent=1 // loop_pre_header
      _
    $region3: #{tpu_custom_call.1} parent=1 // loop_header
      %s13 = sphi 0, %s17
      %p14 = scmp.ge.s32.totalorder %s13, 6
      %s23 = sphi 0, %s25
      %s26 = sphi 0, %s23
      %s27 = sphi 0, %s26
      %s43 = sphi 0, %s27
      %s49 = sphi 0, %s51
      %s52 = sphi 0, %s49
      %s53 = sphi 0, %s52
      %s69 = sphi 0, %s53
    $region4: #{tpu_custom_call.1} parent=1 // loop_header_branch
      %16 = sbr.rel (%p14) target = $region8
    $region5: #{tpu_custom_call.1} parent=1 // loop_body
      %s18 = ssub.s32 %s13, 1
      %s19 = ssub.s32 %s13, 2
      %s20 = sadd.s32 %s13, 1
      %s21 = ssub.s32 %s13, %s20
      %p22 = scmp.eq.s32.totalorder %s21, 0
      %s24 = sadd.s32 %s23, 1
      %s25 = scalar_select %p22, %s23, %s24
      %p28 = pneg %p22
      %p29 = scmp.eq.s32.totalorder %s13, 3
      %p30 = por %p28, %p29
      %p31 = scmp.ne.s32.totalorder %s23, %s26
      %p32 = scmp.eq.s32.totalorder %s13, 0
      %p33 = por %p31, %p32
      %p34 = scmp.ne.s32.totalorder %s23, %s26
      %p35 = scmp.eq.s32.totalorder %s18, 3
      %p36 = por %p34, %p35
      %p37 = scmp.ne.s32.totalorder %s26, %s27
      %p38 = scmp.eq.s32.totalorder %s18, 0
      %p39 = por %p37, %p38
      %p40 = scmp.ne.s32.totalorder %s26, %s27
      %p41 = scmp.eq.s32.totalorder %s19, 3
      %p42 = por %p40, %p41
      %p44 = scmp.ne.s32.totalorder %s27, %s43
      %p45 = scmp.eq.s32.totalorder %s19, 0
      %p46 = por %p44, %p45
      %s47 = ssub.s32 %s13, %s20
      %p48 = scmp.eq.s32.totalorder %s47, 0
      %s50 = sadd.s32 %s49, 1
      %s51 = scalar_select %p48, %s49, %s50
      %p54 = pneg %p48
      %p55 = scmp.eq.s32.totalorder %s13, 3
      %p56 = por %p54, %p55
      %p57 = scmp.ne.s32.totalorder %s49, %s52
      %p58 = scmp.eq.s32.totalorder %s13, 0
      %p59 = por %p57, %p58
      %p60 = scmp.ne.s32.totalorder %s49, %s52
      %p61 = scmp.eq.s32.totalorder %s18, 3
      %p62 = por %p60, %p61
      %p63 = scmp.ne.s32.totalorder %s52, %s53
      %p64 = scmp.eq.s32.totalorder %s18, 0
      %p65 = por %p63, %p64
      %p66 = scmp.ne.s32.totalorder %s52, %s53
      %p67 = scmp.eq.s32.totalorder %s19, 3
      %p68 = por %p66, %p67
      %p70 = scmp.ne.s32.totalorder %s53, %s69
      %p71 = scmp.eq.s32.totalorder %s19, 0
      %p72 = por %p70, %p71
      %p73 = scmp.le.s32.totalorder 1, %s13
      %p74 = scmp.lt.s32.totalorder %s13, 5
      %p75 = pnand %p73, %p74
      %p76 = pneg %p75
      // Predicated region
      $region9: #{tpu_custom_call.1} parent=5 // pred_check
        _
      $region10: #{tpu_custom_call.1} parent=5 // pred_check_branch
        %78 = sbr.rel (%p75) target = $region12
      $region11: #{tpu_custom_call.1} parent=5 // pred_region
        %s79 = ssub.s32 %s13, 1
      $region12: #{tpu_custom_call.1} parent=5 // pred_fallthru
        _
      %p80 = scmp.lt.s32.totalorder %s13, 4
      // Predicated region
      $region13: #{tpu_custom_call.1} parent=5 // pred_check
        %p81 = pneg %p80
      $region14: #{tpu_custom_call.1} parent=5 // pred_check_branch
        %83 = sbr.rel (%p81) target = $region16
      $region15: #{tpu_custom_call.1} parent=5 // pred_region
        // Predicated region
        $region17: #{tpu_custom_call.1} parent=15 // pred_check
          %p84 = pneg %p33
        $region18: #{tpu_custom_call.1} parent=15 // pred_check_branch
          %86 = sbr.rel (%p84) target = $region20
        $region19: #{tpu_custom_call.1} parent=15 // pred_region
          %s87 = sand.u32 %s23, 1
          %s88 = scalar_lea.sflag [#allocation3], %s87
          %s89 = sand.u32 %s23, 1
          %s90 = smul.addr %s89, 32
          %s91 = scalar_lea.vmem [#allocation2], %s90
          %s93 = ssub.s32 512, 512
          %94 = vsyncadd %s88, %s93
          %s95 = smul.addr %s13, 4
          %s96 = smul.addr %s95, 128
          %s97 = scalar_lea.hbm %s0, %s96
          %s98 = sshll.u32 %s91, 4
          %s99 = int_to_ptr.vmem [resolvable:$true] %s98
          %104 = dma.hbm_to_vmem [thread:$0]  %s97, 512, %s99, %s88, 128, 128, 8
        $region20: #{tpu_custom_call.1} parent=15 // pred_fallthru
          _
      $region16: #{tpu_custom_call.1} parent=5 // pred_fallthru
        _
      %p105 = scmp.le.s32.totalorder 1, %s13
      %p106 = scmp.lt.s32.totalorder %s13, 5
      %p107 = pnand %p105, %p106
      %p108 = pneg %p107
      // Predicated region
      $region21: #{tpu_custom_call.1} parent=5 // pred_check
        _
      $region22: #{tpu_custom_call.1} parent=5 // pred_check_branch
        %110 = sbr.rel (%p107) target = $region24
      $region23: #{tpu_custom_call.1} parent=5 // pred_region
        %s111 = ssub.s32 %s13, 1
        %s112 = sand.u32 %s26, 1
        %s113 = scalar_lea.sflag [#allocation3], %s112
        %s114 = sand.u32 %s26, 1
        %s115 = smul.addr %s114, 32
        %s116 = scalar_lea.vmem [#allocation2], %s115
        // Predicated region
        $region25: #{tpu_custom_call.1} parent=23 // pred_check
          %p117 = pneg %p39
        $region26: #{tpu_custom_call.1} parent=23 // pred_check_branch
          %119 = sbr.rel (%p117) target = $region28
        $region27: #{tpu_custom_call.1} parent=23 // pred_region
          %120 = dma.done %s113, 512
        $region28: #{tpu_custom_call.1} parent=23 // pred_fallthru
          _
        %s121 = sand.u32 %s26, 1
        %s122 = scalar_lea.sflag [#allocation3], %s121
        %s123 = sand.u32 %s26, 1
        %s124 = smul.addr %s123, 32
        %s125 = scalar_lea.vmem [#allocation2], %s124
        %p126 = pneg %p39
        %p127 = pneg %p36
        %p128 = pneg %p65
        %p129 = pneg %p62
        %s130 = sand.u32 %s52, 1
        %s131 = scalar_lea.sflag [#allocation4], %s130
        %s132 = sand.u32 %s52, 1
        %s133 = smul.addr %s132, 32
        %s134 = scalar_lea.vmem [#allocation5], %s133
        %v135 = vld [vmem:[%s116] sm:$0xff]
        %v136 = vld [vmem:[%s116 + $0x8] sm:$0xff]
        %v137 = vld [vmem:[%s116 + $0x10] sm:$0xff]
        %v138 = vld [vmem:[%s116 + $0x18] sm:$0xff]
        %vm139 = vcmask 261120
        %v140 = vsel %vm139, %v135, 0.0
        %v141 = vsel %vm139, %v136, 0.0
        %v142 = vadd.f32 %v140, %v141
        %v143 = vsel %vm139, %v137, 0.0
        %v144 = vadd.f32 %v142, %v143
        %v145 = vsel %vm139, %v138, 0.0
        %v146 = vadd.f32 %v144, %v145
        %147 = vadd.xlane.f32.xlu0 %v146
        %v148 = vpop.xlane.xlu0 %147
        %v149 = vrot.slane %v148, 4
        %v150 = vadd.f32 %v148, %v149
        %v151 = vrot.slane %v150, 2
        %v152 = vadd.f32 %v150, %v151
        %v153 = vrot.slane %v152, 1
        %v154 = vadd.f32 %v152, %v153
        %s155 = vtos %v154
        %v156 = vstv %s155
        %v157 = vrcp.pop 1024.0
        %v158 = vmul.f32 %v156, %v157
        %v159 = vsub.f32 %v135, %v158
        %v160 = vsub.f32 %v136, %v158
        %v161 = vsub.f32 %v137, %v158
        %v162 = vsub.f32 %v138, %v158
        %v163 = vmul.f32 %v159, %v159
        %v164 = vmul.f32 %v160, %v160
        %v165 = vmul.f32 %v161, %v161
        %v166 = vmul.f32 %v162, %v162
        %v167 = vsel %vm139, %v163, 0.0
        %v168 = vsel %vm139, %v164, 0.0
        %v169 = vadd.f32 %v167, %v168
        %v170 = vsel %vm139, %v165, 0.0
        %v171 = vadd.f32 %v169, %v170
        %v172 = vsel %vm139, %v166, 0.0
        %v173 = vadd.f32 %v171, %v172
        %174 = vadd.xlane.f32.xlu0 %v173
        %v175 = vpop.xlane.xlu0 %174
        %v176 = vrot.slane %v175, 4
        %v177 = vadd.f32 %v175, %v176
        %v178 = vrot.slane %v177, 2
        %v179 = vadd.f32 %v177, %v178
        %v180 = vrot.slane %v179, 1
        %v181 = vadd.f32 %v179, %v180
        %s182 = vtos %v181
        %v183 = vstv %s182
        %v184 = vrcp.pop 1023.0
        %v185 = vmul.f32 %v183, %v184
        %v186 = vrsqrt.pop %v185
        %v187 = vmul.f32 %v185, %v186
        %vm188 = vcmp.eq.f32.partialorder %v185, inf
        %v189 = vsel %vm188, %v185, %v187
        %vm190 = vcmp.eq.f32.partialorder %v185, 0.0
        %v191 = vand.u32 %v185, 2147483648
        %v192 = vsel %vm190, %v191, %v189
        %v193 = vadd.f32 %v192, 1e-06
        %v194 = vrcp.pop %v193
        %v195 = vmul.f32 %v159, %v194
        %v196 = vmul.f32 %v160, %v194
        %v197 = vmul.f32 %v161, %v194
        %v198 = vmul.f32 %v162, %v194
        %199 = vst.msk [vmem:[%s134] sm:$0xff] %vm139, %v195
        %200 = vst.msk [vmem:[%s134 + $0x8] sm:$0xff] %vm139, %v196
        %201 = vst.msk [vmem:[%s134 + $0x10] sm:$0xff] %vm139, %v197
        %202 = vst.msk [vmem:[%s134 + $0x18] sm:$0xff] %vm139, %v198
        %s203 = sand.u32 %s52, 1
        %s204 = scalar_lea.sflag [#allocation4], %s203
        %s205 = sand.u32 %s52, 1
        %s206 = smul.addr %s205, 32
        %s207 = scalar_lea.vmem [#allocation5], %s206
        // Predicated region
        $region29: #{tpu_custom_call.1} parent=23 // pred_check
          %p208 = pneg %p62
        $region30: #{tpu_custom_call.1} parent=23 // pred_check_branch
          %210 = sbr.rel (%p208) target = $region32
        $region31: #{tpu_custom_call.1} parent=23 // pred_region
          %s212 = ssub.s32 512, 512
          %213 = vsyncadd %s204, %s212
          %s214 = smul.addr %s18, 4
          %s215 = smul.addr %s214, 128
          %s216 = scalar_lea.hbm %s1, %s215
          %s217 = sshll.u32 %s207, 4
          %s218 = int_to_ptr.vmem [resolvable:$true] %s217
          %223 = dma.vmem_to_hbm [thread:$0]  %s218, 512, %s216, %s204, 128, 128, 8
        $region32: #{tpu_custom_call.1} parent=23 // pred_fallthru
          _
      $region24: #{tpu_custom_call.1} parent=5 // pred_fallthru
        _
      %p224 = scmp.le.s32.totalorder 2, %s13
      // Predicated region
      $region33: #{tpu_custom_call.1} parent=5 // pred_check
        %p225 = pneg %p224
      $region34: #{tpu_custom_call.1} parent=5 // pred_check_branch
        %227 = sbr.rel (%p225) target = $region36
      $region35: #{tpu_custom_call.1} parent=5 // pred_region
        %s228 = ssub.s32 %s13, 2
        // Predicated region
        $region37: #{tpu_custom_call.1} parent=35 // pred_check
          %p229 = pneg %p68
        $region38: #{tpu_custom_call.1} parent=35 // pred_check_branch
          %231 = sbr.rel (%p229) target = $region40
        $region39: #{tpu_custom_call.1} parent=35 // pred_region
          %s232 = sand.u32 %s53, 1
          %s233 = scalar_lea.sflag [#allocation4], %s232
          %s234 = sand.u32 %s53, 1
          %s235 = smul.addr %s234, 32
          %s236 = scalar_lea.vmem [#allocation5], %s235
          %237 = dma.done %s233, 512
        $region40: #{tpu_custom_call.1} parent=35 // pred_fallthru
          _
      $region36: #{tpu_custom_call.1} parent=5 // pred_fallthru
        _
    $region6: #{tpu_custom_call.1} parent=1 // loop_footer
      %s17 = sadd.s32 1, %s13
    $region7: #{tpu_custom_call.1} parent=1 // loop_footer_branch
      %12 = sbr.rel target = $region3
    $region8: #{tpu_custom_call.1} parent=1 // loop_exit
      _
    %238 = vsyncpa [#allocation3], 1
    %s239 = scalar_lea.sflag [#allocation3], 1
    %240 = vsyncpa %s239, 1
    %241 = vsyncpa [#allocation4], 1
    %s242 = scalar_lea.sflag [#allocation4], 1
    %243 = vsyncpa %s242, 1

</llo_original>
